<compile_context>
chip_gen: v7x
topology: tpu7x:2x2x1
jax: 0.10.0
libtpu: 0.0.40
codegen_flags: <defaults>
</compile_context>

<pallas_src>
import functools

import jax
import jax.numpy as jnp
from jax.experimental import pallas as pl
from jax.experimental.pallas import tpu as pltpu

_EPS = 1e-10
_LANES = 128
_SUBLANES = 8
_BLOCK_BYTES = 4 * 1024 * 1024  # per-input, per-pipeline-buffer target


def _sublane_multiple(dtype):
    """Rows per whole packed sublane tile: 8 (32-bit), 16 (bf16), 32 (8-bit)."""
    return max(_SUBLANES, (4 * _SUBLANES) // jnp.dtype(dtype).itemsize)


def _megacore_config():
    """Best-effort (tensorcores_per_device, leading-axis dimension semantics).

    Conservative: single-TC chips (v5e/v6e) get 1 so they never pay a
    serialized 2-long leading axis or a wasted overhang-block DMA.  v7x (two
    TensorCores per chip) gets CORE_PARALLEL, which — unlike plain "parallel" —
    actually shards the leading grid axis across both cores.
    """
    # TODO(synk): switch to pltpu.get_tpu_info()/ChipVersion once a stable
    # cores-per-chip field is available; device_kind sniffing is the portable bet.
    try:
        kind = jax.devices()[0].device_kind.lower().replace(" ", "")
    except Exception:
        return 1, pltpu.ARBITRARY
    if "v7" in kind or "tpu7" in kind:
        return 2, pltpu.CORE_PARALLEL
    return 1, pltpu.ARBITRARY


def _accumulate(o_ref, term, *, M, mb, L, blk, need_mask):
    """o_ref (8, L) += per-sublane-slot partial sums of term (mb, L)."""

    def partial_sum(t):
        # (mb, L) -> (mb//8, 8, L) -> sum over axis 0: pure full-vreg VPU adds;
        # the cross-lane/sublane collapse is deferred to the wrapper.
        return jnp.sum(t.reshape(mb // _SUBLANES, _SUBLANES, L), axis=0)

    if not need_mask:
        o_ref[...] += partial_sum(term)
        return

    # True only for the last (possibly partial) real block or a core-split
    # overhang duplicate -- at most one step per core pays the mask.
    is_edge = (blk + 1) * mb > M

    @pl.when(jnp.logical_not(is_edge))
    def _():  # interior blocks: no iota / compare / select at all
        o_ref[...] += partial_sum(term)

    @pl.when(is_edge)
    def _():
        row = blk * mb + jax.lax.broadcasted_iota(jnp.int32, (mb, L), 0)
        # Mask the *term* (not the inputs): garbage rows past M (including any
        # NaN/Inf they might produce) are selected away before accumulation.
        o_ref[...] += partial_sum(jnp.where(row < M, term, 0.0))


def _kl_kernel_no_target(p_ref, o_ref, *, M, mb, L, ncores, need_mask):
    c = pl.program_id(0)
    i = pl.program_id(1)

    @pl.when(i == 0)
    def _():
        o_ref[...] = jnp.zeros_like(o_ref)

    p = p_ref[...].astype(jnp.float32)   # widen in VMEM/vregs, not in HBM
    term = p * jnp.log(p + _EPS)         # one EUP log per element
    _accumulate(o_ref, term, M=M, mb=mb, L=L, blk=i * ncores + c,
                need_mask=need_mask)


def _kl_kernel_with_target(p_ref, q_ref, o_ref, *, M, mb, L, ncores, need_mask):
    c = pl.program_id(0)
    i = pl.program_id(1)

    @pl.when(i == 0)
    def _():
        o_ref[...] = jnp.zeros_like(o_ref)

    p = p_ref[...].astype(jnp.float32)
    q = q_ref[...].astype(jnp.float32)
    # Two-log form matches the reference rounding exactly and costs the same
    # number of EUP pushes as log((p+eps)/(q+eps)) (div = recip + mul).
    # TODO(synk): if a bundle dump ever shows the EUP slot binding (plausible
    # only on v7x with bf16 inputs), A/B (p+eps)*pl.reciprocal(q+eps, approx=True).
    term = p * (jnp.log(p + _EPS) - jnp.log(q + _EPS))
    _accumulate(o_ref, term, M=M, mb=mb, L=L, blk=i * ncores + c,
                need_mask=need_mask)


def _flat_2d_view(x):
    """Copy-free 2-D view of x (plain row-major reshape -> XLA bitcast)."""
    B, C, T, H, W = x.shape
    n = B * C * T * H * W
    if n % _LANES == 0:
        return jnp.reshape(x, (n // _LANES, _LANES))  # lane-dense fast path
    return jnp.reshape(x, (B * C * T, H * W))         # natural frame view


def _kldiv_jnp(pred, target=None):
    """Pure-JAX forward (mirrors the PyTorch module; norm_scalar == 1.0).
    Used as the test reference and as the fallback for degenerate tiny inputs."""
    B, _, T, H, W = pred.shape
    am = jnp.reshape(pred, (B, T, -1)).astype(jnp.float32)
    logp = jnp.log(am + _EPS)
    if target is None:
        log_q = jnp.log(jnp.float32(1.0) / jnp.float32(H * W))
        kl = jnp.sum(am * logp, axis=-1) - log_q
    else:
        logq = jnp.log(jnp.reshape(target, (B, T, -1)).astype(jnp.float32) + _EPS)
        kl = jnp.sum(am * logp, axis=-1) - jnp.sum(am * logq, axis=-1)
    norm = jnp.float32(T) * jnp.log(jnp.float32(1.0) * jnp.float32(H * W))
    return jnp.mean(jnp.sum(kl, axis=-1) / norm)


def kldiv(pred, target=None, *, block_rows=None, num_cores=None):
    """Pallas implementation of slowfast KLDiv.forward (norm_scalar == 1.0)."""
    B, C, T, H, W = pred.shape
    n = B * C * T * H * W
    if target is not None and target.shape != pred.shape:
        raise ValueError("pred/target shape mismatch")

    p2d = _flat_2d_view(pred)
    operands = [p2d]
    if target is not None:
        operands.append(_flat_2d_view(target))
    M, L = p2d.shape

    if M < _SUBLANES:
        # Degenerate tiny input (< 8 rows); a kernel launch is not worthwhile.
        return _kldiv_jnp(pred, target)

    lanes_padded = pl.cdiv(L, _LANES) * _LANES
    itemsize = max(jnp.dtype(x.dtype).itemsize for x in operands)
    sub = max(_sublane_multiple(x.dtype) for x in operands)

    # Block rows: ~_BLOCK_BYTES per input per pipeline buffer to amortize the
    # per-grid-step overhead; never exceeds M, so the only partial block is the
    # trailing edge block (plus at most one core-split overhang duplicate).
    if block_rows is None:
        block_rows = max(sub, (_BLOCK_BYTES // (lanes_padded * itemsize)) // sub * sub)
    else:
        block_rows = max(_SUBLANES, pl.cdiv(block_rows, _SUBLANES) * _SUBLANES)
    mb = min(block_rows, (M // _SUBLANES) * _SUBLANES)
    if mb > sub and mb % sub:
        mb = (mb // sub) * sub  # whole packed (16/32, 128) tiles for narrow dtypes
    num_blocks = pl.cdiv(M, mb)

    if num_cores is None:
        num_cores, lead_sem = _megacore_config()
    else:
        lead_sem = pltpu.PARALLEL if num_cores > 1 else pltpu.ARBITRARY
    ncores = num_cores if num_blocks >= 2 else 1
    if ncores == 1:
        lead_sem = pltpu.ARBITRARY
    steps = pl.cdiv(num_blocks, ncores)
    need_mask = (M % mb != 0) or (num_blocks % ncores != 0)

    def in_map(c, i):
        # Interleave blocks across cores; the (at most one) overhang block is
        # clamped here and fully masked inside the kernel.
        return (jnp.minimum(i * ncores + c, num_blocks - 1), 0)

    in_spec = pl.BlockSpec((mb, L), in_map)
    out_spec = pl.BlockSpec((None, _SUBLANES, L), lambda c, i: (c, 0, 0))
    out_shape = jax.ShapeDtypeStruct((ncores, _SUBLANES, L), jnp.float32)

    vmem_live = len(operands) * 2 * mb * lanes_padded * itemsize  # 2x buffered inputs
    cparams = pltpu.CompilerParams(
        dimension_semantics=(lead_sem, pltpu.ARBITRARY),
        vmem_limit_bytes=int(min(64 << 20, max(16 << 20, 2 * vmem_live))),
    )
    cost = pl.CostEstimate(
        flops=(8 if target is not None else 5) * n,
        transcendentals=(2 if target is not None else 1) * n,
        bytes_accessed=sum(int(x.size) * jnp.dtype(x.dtype).itemsize for x in operands)
        + ncores * _SUBLANES * L * 4,
    )

    kernel_fn = _kl_kernel_with_target if target is not None else _kl_kernel_no_target
    kernel = functools.partial(kernel_fn, M=M, mb=mb, L=L, ncores=ncores,
                               need_mask=need_mask)

    partials = pl.pallas_call(
        kernel,
        out_shape=out_shape,
        grid_spec=pltpu.PrefetchScalarGridSpec(
            num_scalar_prefetch=0,
            grid=(ncores, steps),
            in_specs=[in_spec] * len(operands),
            out_specs=out_spec,
        ),
        compiler_params=cparams,
        cost_estimate=cost,
    )(*operands)

    # Finalize: tiny scalar math; per-core / per-lane partials summed here.
    total = jnp.sum(partials)
    hw = jnp.float32(H * W)
    norm = jnp.float32(T) * jnp.log(jnp.float32(1.0) * hw)  # T * log(norm_scalar * H * W)
    if target is None:
        log_q = jnp.log(jnp.float32(1.0) / hw)              # log(norm_scalar / (H * W))
        total = total - jnp.float32(B * T) * log_q
    return total / (jnp.float32(B) * norm)


if __name__ == "__main__":
    key = jax.random.PRNGKey(0)
    kp, kt = jax.random.split(key)

    # Attention maps (B, C=1, T, H, W): positive, each (b, t) slice sums to 1.
    B, C, T, H, W = 2, 1, 8, 16, 16
    pred = jax.nn.softmax(
        jax.random.normal(kp, (B, C, T, H * W), dtype=jnp.float32), axis=-1
    ).reshape(B, C, T, H, W)
    target = jax.nn.softmax(
        jax.random.normal(kt, (B, C, T, H * W), dtype=jnp.float32), axis=-1
    ).reshape(B, C, T, H, W)

    # target=None path (lane-dense aligned view).
    out_none = jax.block_until_ready(kldiv(pred))
    ref_none = jax.block_until_ready(_kldiv_jnp(pred))
    assert jnp.allclose(out_none, ref_none, rtol=1e-4, atol=1e-5), (out_none, ref_none)

    # target path.
    out_tgt = jax.block_until_ready(kldiv(pred, target))
    ref_tgt = jax.block_until_ready(_kldiv_jnp(pred, target))
    assert jnp.allclose(out_tgt, ref_tgt, rtol=1e-4, atol=1e-5), (out_tgt, ref_tgt)

    # Unaligned spatial size (H=W=14 -> n % 128 != 0): natural (B*C*T, H*W)
    # frame view, masked trailing block, no wrapper pad/copy.
    B2, C2, T2, H2, W2 = 2, 1, 6, 14, 14
    pred2 = jax.nn.softmax(
        jax.random.normal(kp, (B2, C2, T2, H2 * W2), dtype=jnp.float32), axis=-1
    ).reshape(B2, C2, T2, H2, W2)
    tgt2 = jax.nn.softmax(
        jax.random.normal(kt, (B2, C2, T2, H2 * W2), dtype=jnp.float32), axis=-1
    ).reshape(B2, C2, T2, H2, W2)
    out2 = jax.block_until_ready(kldiv(pred2, tgt2))
    ref2 = jax.block_until_ready(_kldiv_jnp(pred2, tgt2))
    assert jnp.allclose(out2, ref2, rtol=1e-4, atol=1e-5), (out2, ref2)

    # Multi-block + forced 2-way core split + partial/overhang masked blocks
    # (M=20 rows of 128 lanes, block_rows=8 -> 3 blocks, 1 clamped duplicate).
    B3, C3, T3, H3, W3 = 2, 1, 5, 16, 16
    pred3 = jax.nn.softmax(
        jax.random.normal(kp, (B3, C3, T3, H3 * W3), dtype=jnp.float32), axis=-1
    ).reshape(B3, C3, T3, H3, W3)
    tgt3 = jax.nn.softmax(
        jax.random.normal(kt, (B3, C3, T3, H3 * W3), dtype=jnp.float32), axis=-1
    ).reshape(B3, C3, T3, H3, W3)
    out3 = jax.block_until_ready(kldiv(pred3, tgt3, block_rows=8, num_cores=2))
    ref3 = jax.block_until_ready(_kldiv_jnp(pred3, tgt3))
    assert jnp.allclose(out3, ref3, rtol=1e-4, atol=1e-5), (out3, ref3)

    # bf16 inputs stay bf16 in HBM (half the DMA bytes), widened in VMEM only.
    # Accuracy asserted against the reference on the same bf16 inputs (both
    # compute in f32), not just isfinite.
    pred_bf, tgt_bf = pred.astype(jnp.bfloat16), target.astype(jnp.bfloat16)
    out_bf = jax.block_until_ready(kldiv(pred_bf, tgt_bf))
    ref_bf = jax.block_until_ready(_kldiv_jnp(pred_bf, tgt_bf))
    assert jnp.allclose(out_bf, ref_bf, rtol=1e-4, atol=1e-5), (out_bf, ref_bf)
    assert bool(jnp.isfinite(out_bf))

    print("KERNEL_OK")
</pallas_src>

<mosaic_0001>
module attributes {stable_mosaic.version = 11 : i64} {
  func.func @_kl_kernel_no_target(%arg0: i32, %arg1: i32, %arg2: memref<32x128xf32, #tpu.memory_space<vmem>>, %arg3: memref<1x8x128xf32, #tpu.memory_space<vmem>>) attributes {dimension_semantics = [#tpu.dimension_semantics<arbitrary>, #tpu.dimension_semantics<arbitrary>], iteration_bounds = array<i64: 1, 1>, scalar_prefetch = 0 : i64, scratch_operands = 0 : i64, tpu.core_type = #tpu.core_type<tc>, window_params = [{transform_indices = @transform_0, window_bounds = array<i64: 32, 128>}, {transform_indices = @transform_1, window_bounds = array<i64: 1, 8, 128>}]} {
    %c0_i32 = arith.constant 0 : i32
    %0 = arith.cmpi eq, %arg1, %c0_i32 : i32
    %1 = arith.extui %0 : i1 to i32
    %c0_i32_0 = arith.constant 0 : i32
    %2 = arith.cmpi ne, %1, %c0_i32_0 : i32
    scf.if %2 {
      %cst_9 = arith.constant 0.000000e+00 : f32
      %16 = vector.broadcast %cst_9 : f32 to vector<8x128xf32>
      %c0_10 = arith.constant 0 : index
      %c0_11 = arith.constant 0 : index
      %c0_12 = arith.constant 0 : index
      %17 = vector.load %arg3[%c0_10, %c0_11, %c0_12] : memref<1x8x128xf32, #tpu.memory_space<vmem>>, vector<1x8x128xf32>
      %18 = vector.shape_cast %17 : vector<1x8x128xf32> to vector<8x128xf32>
      %19 = vector.shape_cast %16 : vector<8x128xf32> to vector<1x8x128xf32>
      tpu.vector_store %arg3[%c0_10, %c0_11, %c0_12], %19 {strides = array<i32>} : memref<1x8x128xf32, #tpu.memory_space<vmem>>, vector<1x8x128xf32>,
    } else {
    }
    %c0 = arith.constant 0 : index
    %c0_1 = arith.constant 0 : index
    %3 = vector.load %arg2[%c0, %c0_1] : memref<32x128xf32, #tpu.memory_space<vmem>>, vector<32x128xf32>
    %cst = arith.constant 1.000000e-10 : f32
    %4 = vector.broadcast %cst : f32 to vector<32x128xf32>
    %5 = arith.addf %3, %4 : vector<32x128xf32>
    %6 = math.log %5 : vector<32x128xf32>
    %7 = arith.mulf %3, %6 : vector<32x128xf32>
    %c0_2 = arith.constant 0 : index
    %c0_3 = arith.constant 0 : index
    %c0_4 = arith.constant 0 : index
    %8 = vector.load %arg3[%c0_2, %c0_3, %c0_4] : memref<1x8x128xf32, #tpu.memory_space<vmem>>, vector<1x8x128xf32>
    %9 = vector.shape_cast %8 : vector<1x8x128xf32> to vector<8x128xf32>
    %10 = vector.shape_cast %7 : vector<32x128xf32> to vector<4x8x128xf32>
    %cst_5 = arith.constant dense<0.000000e+00> : vector<8x128xf32>
    %11 = vector.multi_reduction <add>, %10, %cst_5 [0] : vector<4x8x128xf32> to vector<8x128xf32>
    %12 = arith.addf %9, %11 : vector<8x128xf32>
    %c0_6 = arith.constant 0 : index
    %c0_7 = arith.constant 0 : index
    %c0_8 = arith.constant 0 : index
    %13 = vector.load %arg3[%c0_6, %c0_7, %c0_8] : memref<1x8x128xf32, #tpu.memory_space<vmem>>, vector<1x8x128xf32>
    %14 = vector.shape_cast %13 : vector<1x8x128xf32> to vector<8x128xf32>
    %15 = vector.shape_cast %12 : vector<8x128xf32> to vector<1x8x128xf32>
    tpu.vector_store %arg3[%c0_6, %c0_7, %c0_8], %15 {strides = array<i32>} : memref<1x8x128xf32, #tpu.memory_space<vmem>>, vector<1x8x128xf32>,
    return
  }
  func.func @transform_0(%arg0: i32, %arg1: i32) -> (i32, i32) {
    %c1_i32 = arith.constant 1 : i32
    %0 = arith.muli %arg1, %c1_i32 : i32
    %1 = arith.addi %0, %arg0 : i32
    %c0_i32 = arith.constant 0 : i32
    %2 = arith.minsi %1, %c0_i32 : i32
    %c0_i32_0 = arith.constant 0 : i32
    %c0_i32_1 = arith.constant 0 : i32
    return %2, %c0_i32_0 : i32, i32
  }
  func.func @transform_1(%arg0: i32, %arg1: i32) -> (i32, i32, i32) {
    %c0_i32 = arith.constant 0 : i32
    %c0_i32_0 = arith.constant 0 : i32
    %c0_i32_1 = arith.constant 0 : i32
    return %arg0, %c0_i32, %c0_i32_0 : i32, i32, i32
  }
}

</mosaic_0001>

<llo_original>
// kernel: tpu_custom_call.1
$region0: #{tpu_custom_call.1}
  #allocation0 [shape = 'u32[]', space=smem, size = 0x4, offset = 0x4, fixed_abs, tag = 'smem constant byte address 0x4 - core index']
  #allocation1 [shape = 'u32[144,128]{1,0:T(1,128)}', space=vmem, size = 0x12000, scoped, tag = 'internal scratch']
  %s0 = inlined_call_operand.hbm [shape: f32[32,128], index: 0, kind: input, shape index: {}]
  %s1 = inlined_call_operand.hbm [shape: f32[1,8,128], index: 1, kind: output, shape index: {}]
  %s2 = sld [smem:[#allocation0]]
  $region22: #{tpu_custom_call.1} parent=0
    _
  %s4 = ssub.s32 1, %s2
  %s5 = scalar_select 0, %s4, %s2
  $region1: #{tpu_custom_call.1} parent=0
    #allocation2 [shape = 'u8[16384]{0}', space=vmem, size = 0x4000, scoped, tag = 'input window, operand 0, single buffered']
    #allocation3 [shape = 's32[1]{0}', space=sflag, size = 0x4, scoped, tag = 'scoped memory for tpu_custom_call.1']
    #allocation4 [shape = 's32[1]{0}', space=sflag, size = 0x4, scoped, tag = 'scoped memory for tpu_custom_call.1']
    #allocation5 [shape = 'u8[4096]{0}', space=vmem, size = 0x1000, scoped, tag = 'output window, operand 0, single buffered']
    %6 = vsyncpa [#allocation3], 0
    %7 = vsyncpa [#allocation4], 0
    // Predicated region
    $region2: #{tpu_custom_call.1} parent=1 // pred_check
      _
    $region3: #{tpu_custom_call.1} parent=1 // pred_check_branch
      %9 = sbr.rel (0) target = $region5
    $region4: #{tpu_custom_call.1} parent=1 // pred_region
      %s10 = sadd.s32 0, 0
      %p11 = scmp.lt.s32.totalorder %s10, 0
      %s12 = scalar_select %p11, %s10, 0
      %s13 = smul.u32 4, %s12
      %s15 = ssub.s32 512, 512
      %16 = vsyncadd [#allocation3], %s15
      %s17 = smul.addr %s13, 128
      %s18 = scalar_lea.hbm %s0, %s17
      %s19 = sshll.u32 [#allocation2], 4
      %s20 = int_to_ptr.vmem [resolvable:$true] %s19
      %25 = dma.hbm_to_vmem [thread:$0]  %s18, 512, %s20, [#allocation3], 128, 128, 8
    $region5: #{tpu_custom_call.1} parent=1 // pred_fallthru
      _
    // Predicated region
    $region6: #{tpu_custom_call.1} parent=1 // pred_check
      _
    $region7: #{tpu_custom_call.1} parent=1 // pred_check_branch
      %27 = sbr.rel (0) target = $region9
    $region8: #{tpu_custom_call.1} parent=1 // pred_region
      %28 = dma.done [#allocation3], 512
    $region9: #{tpu_custom_call.1} parent=1 // pred_fallthru
      _
    %s29 = sadd.s32 0, 0
    %p30 = scmp.lt.s32.totalorder %s29, 0
    %s31 = scalar_select %p30, %s29, 0
    %s32 = smul.u32 4, %s31
    %p33 = scmp.eq.s32.totalorder 0, 0
    // Predicated region
    $region10: #{tpu_custom_call.1} parent=1 // pred_check
      %p34 = pneg %p33
    $region11: #{tpu_custom_call.1} parent=1 // pred_check_branch
      %36 = sbr.rel (%p34) target = $region13
    $region12: #{tpu_custom_call.1} parent=1 // pred_region
      %37 = vst [vmem:[#allocation5] sm:$0xff] 0.0
    $region13: #{tpu_custom_call.1} parent=1 // pred_fallthru
      _
    %v38 = vld [vmem:[#allocation2] sm:$0xff]
    %v39 = vld [vmem:[#allocation2 + $0x8] sm:$0xff]
    %v40 = vld [vmem:[#allocation2 + $0x10] sm:$0xff]
    %v41 = vld [vmem:[#allocation2 + $0x18] sm:$0xff]
    %v42 = vadd.f32 %v38, 1e-10
    %v43 = vadd.f32 %v39, 1e-10
    %v44 = vadd.f32 %v40, 1e-10
    %v45 = vadd.f32 %v41, 1e-10
    %v46 = vlog2.pop %v42
    %v47 = vmul.f32 %v46, 0.6931472
    %v48 = vlog2.pop %v43
    %v49 = vmul.f32 %v48, 0.6931472
    %v50 = vlog2.pop %v44
    %v51 = vmul.f32 %v50, 0.6931472
    %v52 = vlog2.pop %v45
    %v53 = vmul.f32 %v52, 0.6931472
    %v54 = vmul.f32 %v38, %v47
    %v55 = vmul.f32 %v39, %v49
    %v56 = vmul.f32 %v40, %v51
    %v57 = vmul.f32 %v41, %v53
    %v58 = vld [vmem:[#allocation5] sm:$0xff]
    %v59 = vadd.f32 %v54, %v55
    %v60 = vadd.f32 %v59, %v56
    %v61 = vadd.f32 %v60, %v57
    %v62 = vadd.f32 %v58, %v61
    %63 = vst [vmem:[#allocation5] sm:$0xff] %v62
    // Predicated region
    $region14: #{tpu_custom_call.1} parent=1 // pred_check
      _
    $region15: #{tpu_custom_call.1} parent=1 // pred_check_branch
      %65 = sbr.rel (0) target = $region17
    $region16: #{tpu_custom_call.1} parent=1 // pred_region
      %s67 = ssub.s32 128, 128
      %68 = vsyncadd [#allocation4], %s67
      %s70 = sshll.u32 [#allocation5], 4
      %s71 = int_to_ptr.vmem [resolvable:$true] %s70
      %73 = dma.vmem_to_hbm [thread:$0]  %s71, 128, %s1, [#allocation4]
    $region17: #{tpu_custom_call.1} parent=1 // pred_fallthru
      _
    // Predicated region
    $region18: #{tpu_custom_call.1} parent=1 // pred_check
      _
    $region19: #{tpu_custom_call.1} parent=1 // pred_check_branch
      %75 = sbr.rel (0) target = $region21
    $region20: #{tpu_custom_call.1} parent=1 // pred_region
      %76 = dma.done [#allocation4], 128
    $region21: #{tpu_custom_call.1} parent=1 // pred_fallthru
      _
    %77 = vsyncpa [#allocation3], 1
    %78 = vsyncpa [#allocation4], 1

</llo_original>
